<compile_context>
chip_gen: v6e
topology: v6e:2x2x1
jax: 0.10.0
libtpu: 0.0.40
codegen_flags: <defaults>
</compile_context>

<pallas_src>
import jax
import jax.numpy as jnp
from jax.experimental import pallas as pl
from jax.experimental.pallas import tpu as pltpu


def make_positional_weight(d_model: int, max_len: int) -> jnp.ndarray:
    """Reproduce AddPositionalEncoding._initialize_weight exactly.

    For pos in 1..max_len, i in 1..d_model (note: left-to-right precedence in
    the torch source means the exponent is ((2*i)//2)/d_model == i/d_model):
        w = pos / 10000 ** (i / d_model)
        pe[pos-1, i-1] = sin(w) if i % 2 == 0 else cos(w)
    """
    pos = jnp.arange(1, max_len + 1, dtype=jnp.float32)[:, None]      # (max_len, 1)
    i = jnp.arange(1, d_model + 1, dtype=jnp.int32)[None, :]          # (1, d_model)
    exponent = ((2 * i) // 2).astype(jnp.float32) / float(d_model)    # == i / d_model
    w = pos / jnp.power(10000.0, exponent)                            # (max_len, d_model)
    even = (i % 2) == 0
    pe = jnp.where(even, jnp.sin(w), jnp.cos(w))
    return pe.astype(jnp.float32)


def _add_pe_kernel(x_ref, pe_ref, o_ref):
    # x_ref/o_ref: (B, tL), pe_ref: (1, tL); plain full-vreg VPU add with a
    # single sublane broadcast of the PE tile across the batch rows.
    o_ref[...] = x_ref[...] + pe_ref[...]


def _choose_tile(L: int, B: int, bytes_per_elem: int, budget_bytes: int = 2 << 20) -> int:
    """Largest multiple-of-128 tile that divides L and keeps one (B, tL) block
    under ~2 MiB (so double-buffered in/out blocks stay far below even v7x's
    64 MiB VMEM). Falls back to the full axis if L is not 128-aligned (a block
    equal to the full array dim is always legal)."""
    if L % 128 != 0:
        return L
    max_elems = max(128, budget_bytes // max(1, B * bytes_per_elem))
    cand = min((max_elems // 128) * 128, L)
    best = 128
    t = 128
    while t <= cand:
        if L % t == 0:
            best = t
        t += 128
    return best


def add_positional_encoding(x: jnp.ndarray, positional_weight: jnp.ndarray) -> jnp.ndarray:
    """x: (B, S, D); positional_weight: (max_len, D). Returns x + pe[:S][None]."""
    B, S, D = x.shape
    pe = positional_weight[:S, :].astype(x.dtype)   # slice to seq_len (glue)

    # Flatten (S, D) -> L so the output lane dimension is large & 128-aligned.
    L = S * D
    x2 = x.reshape(B, L)
    pe2 = pe.reshape(1, L)

    itemsize = jnp.dtype(x.dtype).itemsize
    tL = _choose_tile(L, B, itemsize)
    grid = (L // tL,)

    out2 = pl.pallas_call(
        _add_pe_kernel,
        out_shape=jax.ShapeDtypeStruct((B, L), x.dtype),
        grid_spec=pltpu.PrefetchScalarGridSpec(
            num_scalar_prefetch=0,
            grid=grid,
            in_specs=[
                pl.BlockSpec((B, tL), lambda l: (0, l)),   # x tile
                pl.BlockSpec((1, tL), lambda l: (0, l)),   # pe tile (fetched once per tile)
            ],
            out_specs=pl.BlockSpec((B, tL), lambda l: (0, l)),
        ),
        compiler_params=pltpu.CompilerParams(
            dimension_semantics=("parallel",),   # independent tiles -> megacore sharding
        ),
    )(x2, pe2)

    return out2.reshape(B, S, D)


if __name__ == "__main__":
    d_model = 32
    max_len = 16
    batch = 2
    seq_len = 8

    key = jax.random.PRNGKey(0)
    x = jax.random.normal(key, (batch, seq_len, d_model), dtype=jnp.float32)

    pe_table = make_positional_weight(d_model, max_len)

    out = add_positional_encoding(x, pe_table)
    out = jax.block_until_ready(out)

    # Reference check in plain JAX (same semantics as the torch forward).
    ref = x + pe_table[:seq_len, :][None, :, :]
    assert out.shape == (batch, seq_len, d_model)
    assert jnp.allclose(out, ref, atol=1e-6), "mismatch vs reference"

    print("KERNEL_OK")
</pallas_src>

<mosaic_0001>
module attributes {stable_mosaic.version = 11 : i64} {
  func.func @_add_pe_kernel(%arg0: i32, %arg1: memref<2x256xf32, #tpu.memory_space<vmem>>, %arg2: memref<1x256xf32, #tpu.memory_space<vmem>>, %arg3: memref<2x256xf32, #tpu.memory_space<vmem>>) attributes {dimension_semantics = [#tpu.dimension_semantics<parallel>], iteration_bounds = array<i64: 1>, scalar_prefetch = 0 : i64, scratch_operands = 0 : i64, tpu.core_type = #tpu.core_type<tc>, window_params = [{transform_indices = @transform_0, window_bounds = array<i64: 2, 256>}, {transform_indices = @transform_1, window_bounds = array<i64: 1, 256>}, {transform_indices = @transform_2, window_bounds = array<i64: 2, 256>}]} {
    %c0 = arith.constant 0 : index
    %c0_0 = arith.constant 0 : index
    %0 = vector.load %arg1[%c0, %c0_0] : memref<2x256xf32, #tpu.memory_space<vmem>>, vector<2x256xf32>
    %c0_1 = arith.constant 0 : index
    %c0_2 = arith.constant 0 : index
    %1 = vector.load %arg2[%c0_1, %c0_2] : memref<1x256xf32, #tpu.memory_space<vmem>>, vector<1x256xf32>
    %2 = vector.broadcast %1 : vector<1x256xf32> to vector<2x256xf32>
    %3 = arith.addf %0, %2 : vector<2x256xf32>
    %c0_3 = arith.constant 0 : index
    %c0_4 = arith.constant 0 : index
    %4 = vector.load %arg3[%c0_3, %c0_4] : memref<2x256xf32, #tpu.memory_space<vmem>>, vector<2x256xf32>
    tpu.vector_store %arg3[%c0_3, %c0_4], %3 {strides = array<i32>} : memref<2x256xf32, #tpu.memory_space<vmem>>, vector<2x256xf32>,
    return
  }
  func.func @transform_0(%arg0: i32) -> (i32, i32) {
    %c0_i32 = arith.constant 0 : i32
    %c0_i32_0 = arith.constant 0 : i32
    return %c0_i32, %arg0 : i32, i32
  }
  func.func @transform_1(%arg0: i32) -> (i32, i32) {
    %c0_i32 = arith.constant 0 : i32
    %c0_i32_0 = arith.constant 0 : i32
    return %c0_i32, %arg0 : i32, i32
  }
  func.func @transform_2(%arg0: i32) -> (i32, i32) {
    %c0_i32 = arith.constant 0 : i32
    %c0_i32_0 = arith.constant 0 : i32
    return %c0_i32, %arg0 : i32, i32
  }
}

</mosaic_0001>

<llo_original>
// kernel: tpu_custom_call.1
$region0: #{tpu_custom_call.1}
  #allocation0 [shape = 'u32[]', space=smem, size = 0x4, offset = 0x4, fixed_abs, tag = 'smem constant byte address 0x4 - core index']
  #allocation1 [shape = 'u32[144,128]{1,0:T(1,128)}', space=vmem, size = 0x12000, scoped, tag = 'internal scratch']
  %s0 = inlined_call_operand.hbm [shape: f32[2,256], index: 0, kind: input, shape index: {}]
  %s1 = inlined_call_operand.hbm [shape: f32[1,256], index: 1, kind: input, shape index: {}]
  %s2 = inlined_call_operand.hbm [shape: f32[2,256], index: 2, kind: output, shape index: {}]
  %s3 = sld [smem:[#allocation0]]
  $region26: #{tpu_custom_call.1} parent=0
    _
  %s5 = ssub.s32 1, %s3
  %s6 = scalar_select 0, %s5, %s3
  $region1: #{tpu_custom_call.1} parent=0
    #allocation2 [shape = 'u8[2048]{0}', space=vmem, size = 0x800, scoped, tag = 'input window, operand 0, single buffered']
    #allocation3 [shape = 's32[1]{0}', space=sflag, size = 0x4, scoped, tag = 'scoped memory for tpu_custom_call.1']
    #allocation4 [shape = 's32[1]{0}', space=sflag, size = 0x4, scoped, tag = 'scoped memory for tpu_custom_call.1']
    #allocation5 [shape = 'u8[1024]{0}', space=vmem, size = 0x400, scoped, tag = 'input window, operand 1, single buffered']
    #allocation6 [shape = 's32[1]{0}', space=sflag, size = 0x4, scoped, tag = 'scoped memory for tpu_custom_call.1']
    #allocation7 [shape = 'u8[2048]{0}', space=vmem, size = 0x800, scoped, tag = 'output window, operand 0, single buffered']
    %7 = vsyncpa [#allocation3], 0
    %8 = vsyncpa [#allocation6], 0
    %9 = vsyncpa [#allocation4], 0
    // Predicated region
    $region2: #{tpu_custom_call.1} parent=1 // pred_check
      _
    $region3: #{tpu_custom_call.1} parent=1 // pred_check_branch
      %11 = sbr.rel (0) target = $region5
    $region4: #{tpu_custom_call.1} parent=1 // pred_region
      %s13 = ssub.s32 64, 64
      %14 = vsyncadd [#allocation3], %s13
      %s16 = sshll.u32 [#allocation2], 4
      %s17 = int_to_ptr.vmem [resolvable:$true] %s16
      %19 = dma.hbm_to_vmem [thread:$0]  %s0, 64, %s17, [#allocation3]
    $region5: #{tpu_custom_call.1} parent=1 // pred_fallthru
      _
    // Predicated region
    $region6: #{tpu_custom_call.1} parent=1 // pred_check
      _
    $region7: #{tpu_custom_call.1} parent=1 // pred_check_branch
      %21 = sbr.rel (0) target = $region9
    $region8: #{tpu_custom_call.1} parent=1 // pred_region
      %s23 = ssub.s32 32, 32
      %24 = vsyncadd [#allocation6], %s23
      %s26 = sshll.u32 [#allocation5], 4
      %s27 = int_to_ptr.vmem [resolvable:$true] %s26
      %29 = dma.hbm_to_vmem [thread:$0]  %s1, 32, %s27, [#allocation6]
    $region9: #{tpu_custom_call.1} parent=1 // pred_fallthru
      _
    // Predicated region
    $region10: #{tpu_custom_call.1} parent=1 // pred_check
      _
    $region11: #{tpu_custom_call.1} parent=1 // pred_check_branch
      %31 = sbr.rel (0) target = $region13
    $region12: #{tpu_custom_call.1} parent=1 // pred_region
      %32 = dma.done [#allocation3], 64
    $region13: #{tpu_custom_call.1} parent=1 // pred_fallthru
      _
    // Predicated region
    $region14: #{tpu_custom_call.1} parent=1 // pred_check
      _
    $region15: #{tpu_custom_call.1} parent=1 // pred_check_branch
      %34 = sbr.rel (0) target = $region17
    $region16: #{tpu_custom_call.1} parent=1 // pred_region
      %35 = dma.done [#allocation6], 32
    $region17: #{tpu_custom_call.1} parent=1 // pred_fallthru
      _
    %v36 = vld [vmem:[#allocation2] sm:$0xf]
    %v37 = vld [vmem:[#allocation5] sm:$0x3]
    %v39 = vlaneseq
    %v40 = vshrl.u32 %v39, 7
    %v41 = vsub.s32 0, %v40
    %v42 = vrot.slane %v37, %v41
    %v43 = vlaneseq
    %v44 = vshrl.u32 %v43, 7
    %v45 = vsub.s32 1, %v44
    %v46 = vrot.slane %v37, %v45
    %v47 = vcombine.low %v42, %v46
    %v49 = vunpack.c.l.s4 1983009808
    %v50 = vunpack.c.0.s8 %v49
    %v51 = vlaneseq
    %v52 = vshrl.u32 %v51, 7
    %v53 = vsub.s32 %v50, %v52
    %v54 = vrot.slane %v47, %v53
    %v56 = vadd.f32 %v36, %v54
    %57 = vst [vmem:[#allocation7] sm:$0xf] %v56
    // Predicated region
    $region18: #{tpu_custom_call.1} parent=1 // pred_check
      _
    $region19: #{tpu_custom_call.1} parent=1 // pred_check_branch
      %59 = sbr.rel (0) target = $region21
    $region20: #{tpu_custom_call.1} parent=1 // pred_region
      %s61 = ssub.s32 64, 64
      %62 = vsyncadd [#allocation4], %s61
      %s64 = sshll.u32 [#allocation7], 4
      %s65 = int_to_ptr.vmem [resolvable:$true] %s64
      %67 = dma.vmem_to_hbm [thread:$0]  %s65, 64, %s2, [#allocation4]
    $region21: #{tpu_custom_call.1} parent=1 // pred_fallthru
      _
    // Predicated region
    $region22: #{tpu_custom_call.1} parent=1 // pred_check
      _
    $region23: #{tpu_custom_call.1} parent=1 // pred_check_branch
      %69 = sbr.rel (0) target = $region25
    $region24: #{tpu_custom_call.1} parent=1 // pred_region
      %70 = dma.done [#allocation4], 64
    $region25: #{tpu_custom_call.1} parent=1 // pred_fallthru
      _
    %71 = vsyncpa [#allocation3], 1
    %72 = vsyncpa [#allocation6], 1
    %73 = vsyncpa [#allocation4], 1

</llo_original>
